<compile_context>
chip_gen: v5e
topology: v5e:2x2
jax: 0.10.0
libtpu: 0.0.40
codegen_flags: <defaults>
</compile_context>

<pallas_src>
import functools

import jax
import jax.numpy as jnp
from jax import lax
from jax.experimental import pallas as pl
from jax.experimental.pallas import tpu as pltpu


def _round_up(v, m):
    return ((v + m - 1) // m) * m


def _vmem_budget_bytes():
    """75% of this generation's per-core VMEM; conservative default if query fails."""
    try:
        info = pltpu.get_tpu_info()
        cap = getattr(info, "vmem_capacity_bytes", None)
        if cap:
            return int(0.75 * int(cap))
    except Exception:
        pass
    return 48 << 20  # 75% of v7x's 64 MiB -> safe on every generation


def _pick_t_o(o):
    """Output-channel tile: keep O padding small (one tile <=256 ch, else 128-wide tiles)."""
    return _round_up(max(o, 8), 8) if o <= 256 else 128


# ----------------------------------------------------------------------------------------------
# Fused implicit-im2col kernel (stride == 1).
# ----------------------------------------------------------------------------------------------
def _fused_conv_kernel(x_ref, w_ref, b_ref, o_ref, *, bn, kh, kw, dil, wpad, l_out):
    # x_ref: (bn, C, L_in) bf16 flat padded image slab
    # w_ref: (KH*KW, T_O, C) bf16      b_ref: (T_O, 1) f32
    # o_ref: (bn, T_O, L_out)
    bias = b_ref[...]
    for b in range(bn):
        acc = None
        for i in range(kh):
            for j in range(kw):
                off = dil * (i * wpad + j)               # static, contiguous lane slice
                xs = x_ref[b, :, pl.ds(off, l_out)]      # (C, L_out)
                contrib = jnp.dot(w_ref[i * kw + j], xs,
                                  preferred_element_type=jnp.float32)
                acc = contrib if acc is None else acc + contrib
        o_ref[b] = (acc + bias).astype(o_ref.dtype)


def _conv_fused(x, w_packed, b_packed, o, kh, kw, padding, dilation, t_o, budget):
    """stride == 1 conv; returns None if the fused slab does not fit the VMEM budget."""
    n, c, h, w = x.shape
    h_pad, w_pad = h + 2 * padding, w + 2 * padding
    oh = h_pad - dilation * (kh - 1)
    ow = w_pad - dilation * (kw - 1)
    assert oh > 0 and ow > 0, "kernel larger than (padded) input"

    l_wide = (oh - 1) * w_pad + ow                 # flat output incl. row-wrap garbage cols
    l_out = _round_up(l_wide, 128)                 # lane-dense stores
    off_max = dilation * ((kh - 1) * w_pad + (kw - 1))
    l_in = off_max + l_out                         # flat input length needed per channel

    mxu_dtype = w_packed.dtype
    in_b = jnp.dtype(mxu_dtype).itemsize
    out_b = jnp.dtype(x.dtype).itemsize
    o_pad = w_packed.shape[1]
    o_tiles = o_pad // t_o

    def est(bn):
        return (2 * bn * c * l_in * in_b           # x slab (double-buffered)
                + 2 * kh * kw * t_o * c * in_b     # weight tile
                + 2 * t_o * 4                      # bias
                + 2 * bn * t_o * l_out * out_b     # output tile (double-buffered)
                + c * l_out * in_b                 # live tap slice
                + 2 * t_o * l_out * 4              # live f32 accumulator
                + (2 << 20))                       # margin

    # Fold batch into the block (cap 8 to bound trace/unroll size); bn must divide N.
    divisors = [d for d in range(min(n, 8), 0, -1) if n % d == 0]
    fitting = [d for d in divisors if est(d) <= budget]
    if not fitting:
        return None                                # too big for the fused slab -> fallback
    bn = fitting[0]
    # v7x megacore friendliness: prefer an even number of grid steps when nearly free.
    if ((n // bn) * o_tiles) % 2 == 1:
        for d in fitting:
            if ((n // d) * o_tiles) % 2 == 0 and (n // d) <= 2 * (n // bn):
                bn = d
                break

    x_flat = jnp.pad(x, ((0, 0), (0, 0), (padding, padding), (padding, padding)))
    x_flat = x_flat.reshape(n, c, h_pad * w_pad).astype(mxu_dtype)
    x_flat = jnp.pad(x_flat, ((0, 0), (0, 0), (0, l_in - h_pad * w_pad)))

    kernel = functools.partial(_fused_conv_kernel, bn=bn, kh=kh, kw=kw,
                               dil=dilation, wpad=w_pad, l_out=l_out)
    grid = (n // bn, o_tiles)

    out_wide = pl.pallas_call(
        kernel,
        out_shape=jax.ShapeDtypeStruct((n, o_pad, l_out), x.dtype),
        grid_spec=pltpu.PrefetchScalarGridSpec(
            num_scalar_prefetch=0,
            grid=grid,
            in_specs=[
                pl.BlockSpec((bn, c, l_in), lambda ni, oi: (ni, 0, 0)),       # image slab
                pl.BlockSpec((kh * kw, t_o, c), lambda ni, oi: (0, oi, 0)),   # weight tile
                pl.BlockSpec((t_o, 1), lambda ni, oi: (oi, 0)),               # bias tile
            ],
            out_specs=pl.BlockSpec((bn, t_o, l_out), lambda ni, oi: (ni, oi, 0)),
        ),
        compiler_params=pltpu.CompilerParams(
            dimension_semantics=("parallel", "parallel"),
            vmem_limit_bytes=int(budget)),
    )(x_flat, w_packed, b_packed)

    # Drop padded channels and the row-wrap garbage columns; pure reshape + slice on the
    # (small) output, no transpose.
    need = oh * w_pad
    if l_out < need:
        out_wide = jnp.pad(out_wide, ((0, 0), (0, 0), (0, need - l_out)))
    out = out_wide[:, :o, :need].reshape(n, o, oh, w_pad)[:, :, :, :ow]
    return out


# ----------------------------------------------------------------------------------------------
# Fallback: materialized im2col + tiled GEMM (stride > 1, or image slab exceeds VMEM budget).
# TODO(synk): fuse im2col here too via manual halo-slab DMA (memory_space=pl.ANY + P4).
# ----------------------------------------------------------------------------------------------
def _gemm_conv_kernel(p_ref, w_ref, b_ref, o_ref):
    acc = jnp.dot(w_ref[...], p_ref[0], preferred_element_type=jnp.float32)
    o_ref[0] = (acc + b_ref[...]).astype(o_ref.dtype)


def _im2col_nchw(x, kh, kw, stride, padding, dilation):
    n, c, h, w = x.shape
    x_pad = jnp.pad(x, ((0, 0), (0, 0), (padding, padding), (padding, padding)))
    oh = (h + 2 * padding - dilation * (kh - 1) - 1) // stride + 1
    ow = (w + 2 * padding - dilation * (kw - 1) - 1) // stride + 1
    cols = []
    for i in range(kh):
        for j in range(kw):
            cols.append(x_pad[:, :,
                              i * dilation: i * dilation + (oh - 1) * stride + 1: stride,
                              j * dilation: j * dilation + (ow - 1) * stride + 1: stride])
    patches = jnp.stack(cols, axis=2)                    # (N, C, KH*KW, OH, OW)
    return patches.reshape(n, c * kh * kw, oh * ow), oh, ow


def _conv_gemm(x, w_flat, b_packed, o, kh, kw, stride, padding, dilation, t_o, budget):
    n, c, h, w = x.shape
    patches, oh, ow = _im2col_nchw(x, kh, kw, stride, padding, dilation)
    hw = oh * ow
    k = c * kh * kw
    mxu_dtype = w_flat.dtype
    in_b = jnp.dtype(mxu_dtype).itemsize
    o_pad = w_flat.shape[0]

    if hw < 128:
        t_hw = hw                                        # full-extent lane block (legal)
    else:
        t_hw = min(2048, (hw // 128) * 128)
        while t_hw > 128:
            need = (3 * k * t_hw * in_b + 2 * t_o * t_hw * 4
                    + 2 * t_o * k * in_b + (2 << 20))
            if need <= budget:
                break
            t_hw -= 128

    patches = patches.astype(mxu_dtype)
    grid = (n, o_pad // t_o, pl.cdiv(hw, t_hw))
    out = pl.pallas_call(
        _gemm_conv_kernel,
        out_shape=jax.ShapeDtypeStruct((n, o_pad, hw), x.dtype),
        grid_spec=pltpu.PrefetchScalarGridSpec(
            num_scalar_prefetch=0,
            grid=grid,
            in_specs=[
                pl.BlockSpec((1, k, t_hw), lambda ni, oi, ji: (ni, 0, ji),
                             pipeline_mode=pl.Buffered(3)),
                pl.BlockSpec((t_o, k), lambda ni, oi, ji: (oi, 0)),
                pl.BlockSpec((t_o, 1), lambda ni, oi, ji: (oi, 0)),
            ],
            out_specs=pl.BlockSpec((1, t_o, t_hw), lambda ni, oi, ji: (ni, oi, ji)),
        ),
        compiler_params=pltpu.CompilerParams(
            dimension_semantics=("parallel", "parallel", "parallel"),
            vmem_limit_bytes=int(budget)),
    )(patches, w_flat, b_packed)
    return out[:, :o, :].reshape(n, o, oh, ow)


# ----------------------------------------------------------------------------------------------
# Module wrapper: fixed random weights, preprocessing hoisted out of the forward path.
# ----------------------------------------------------------------------------------------------
class RandomFixedConv2d:
    def __init__(self, in_channels, out_channels, kernel_size, stride=1, padding=0,
                 dilation=1, groups=1, bias=True, padding_mode="zeros", *,
                 key, dtype=jnp.float32):
        assert padding_mode == "zeros"  # TODO(synk): other padding modes not implemented
        if isinstance(kernel_size, int):
            kernel_size = (kernel_size, kernel_size)
        assert in_channels % groups == 0 and out_channels % groups == 0
        kh, kw = kernel_size
        self.in_channels, self.out_channels = in_channels, out_channels
        self.kh, self.kw = kh, kw
        self.stride, self.padding, self.dilation, self.groups = stride, padding, dilation, groups

        # nn.Conv2d-style kaiming-uniform init; parameters are fixed (never trained).
        fan_in = (in_channels // groups) * kh * kw
        bound = 1.0 / (fan_in ** 0.5)
        kw_key, kb_key = jax.random.split(key)
        self.weight = jax.random.uniform(
            kw_key, (out_channels, in_channels // groups, kh, kw), dtype, -bound, bound)
        self.bias = (jax.random.uniform(kb_key, (out_channels,), dtype, -bound, bound)
                     if bias else None)

        # --- hoisted fixed-parameter preprocessing (done once, not per forward) -------------
        self._mxu_dtype = jnp.bfloat16 if dtype == jnp.float32 else dtype
        og, cg = out_channels // groups, in_channels // groups
        self._t_o = _pick_t_o(og)
        o_pad = _round_up(og, self._t_o)
        b_full = (self.bias if self.bias is not None
                  else jnp.zeros((out_channels,), jnp.float32))
        self._w_fused, self._w_gemm, self._b_packed = [], [], []
        for g in range(groups):
            wg = self.weight[g * og:(g + 1) * og]                     # (og, cg, kh, kw)
            bg = b_full[g * og:(g + 1) * og].astype(jnp.float32)
            wg_p = jnp.pad(wg, ((0, o_pad - og), (0, 0), (0, 0), (0, 0)))
            self._b_packed.append(jnp.pad(bg, (0, o_pad - og)).reshape(o_pad, 1))
            # fused layout: (KH*KW, O_pad, C) -> per-tap (t_o, C) slices inside the kernel
            self._w_fused.append(
                jnp.transpose(wg_p, (2, 3, 0, 1)).reshape(kh * kw, o_pad, cg)
                .astype(self._mxu_dtype))
            # GEMM fallback layout: (O_pad, C*KH*KW), K c-major matching _im2col_nchw
            self._w_gemm.append(wg_p.reshape(o_pad, cg * kh * kw).astype(self._mxu_dtype))

    def __call__(self, x):
        budget = _vmem_budget_bytes()
        og, cg = self.out_channels // self.groups, self.in_channels // self.groups
        outs = []
        for g in range(self.groups):
            xg = x[:, g * cg:(g + 1) * cg]
            out = None
            if self.stride == 1:
                out = _conv_fused(xg, self._w_fused[g], self._b_packed[g], og,
                                  self.kh, self.kw, self.padding, self.dilation,
                                  self._t_o, budget)
            if out is None:
                out = _conv_gemm(xg, self._w_gemm[g], self._b_packed[g], og,
                                 self.kh, self.kw, self.stride, self.padding,
                                 self.dilation, self._t_o, budget)
            outs.append(out)
        return outs[0] if self.groups == 1 else jnp.concatenate(outs, axis=1)


if __name__ == "__main__":
    N, C, H, W = 2, 4, 16, 16
    O, KH, KW = 8, 3, 3
    STRIDE, PADDING, DILATION = 1, 1, 1

    key = jax.random.PRNGKey(0)
    k_mod, k_x = jax.random.split(key)
    conv = RandomFixedConv2d(C, O, (KH, KW), stride=STRIDE, padding=PADDING,
                             dilation=DILATION, bias=True, key=k_mod)
    x = jax.random.normal(k_x, (N, C, H, W), dtype=jnp.float32)

    fwd = jax.jit(conv.__call__)
    out = jax.block_until_ready(fwd(x))

    # Tight reference: f32 conv on bf16-rounded inputs (the kernel's bf16-in / f32-acc math).
    # Loose reference: full-f32 conv.
    xq = x.astype(jnp.bfloat16).astype(jnp.float32)
    wq = conv.weight.astype(jnp.bfloat16).astype(jnp.float32)
    ref_q = lax.conv_general_dilated(
        xq, wq, window_strides=(STRIDE, STRIDE),
        padding=[(PADDING, PADDING), (PADDING, PADDING)],
        rhs_dilation=(DILATION, DILATION),
        dimension_numbers=("NCHW", "OIHW", "NCHW"),
        precision=lax.Precision.HIGHEST) + conv.bias.reshape(1, O, 1, 1)
    ref_f = lax.conv_general_dilated(
        x, conv.weight, window_strides=(STRIDE, STRIDE),
        padding=[(PADDING, PADDING), (PADDING, PADDING)],
        rhs_dilation=(DILATION, DILATION),
        dimension_numbers=("NCHW", "OIHW", "NCHW"),
        precision=lax.Precision.HIGHEST) + conv.bias.reshape(1, O, 1, 1)

    assert out.shape == (N, O, H, W), out.shape
    assert jnp.allclose(out, ref_q, atol=1e-2, rtol=1e-2)
    assert jnp.allclose(out, ref_f, atol=5e-2, rtol=5e-2)
    print("KERNEL_OK")
</pallas_src>

<mosaic_0001>
module attributes {stable_mosaic.version = 11 : i64} {
  func.func @_fused_conv_kernel(%arg0: i32, %arg1: i32, %arg2: memref<1x4x422xbf16, #tpu.memory_space<vmem>>, %arg3: memref<9x8x4xbf16, #tpu.memory_space<vmem>>, %arg4: memref<8x1xf32, #tpu.memory_space<vmem>>, %arg5: memref<1x8x384xf32, #tpu.memory_space<vmem>>) attributes {dimension_semantics = [#tpu.dimension_semantics<parallel>, #tpu.dimension_semantics<parallel>], iteration_bounds = array<i64: 2, 1>, scalar_prefetch = 0 : i64, scratch_operands = 0 : i64, tpu.core_type = #tpu.core_type<tc>, window_params = [{transform_indices = @transform_0, window_bounds = array<i64: 1, 4, 422>}, {transform_indices = @transform_1, window_bounds = array<i64: 9, 8, 4>}, {transform_indices = @transform_2, window_bounds = array<i64: 8, 1>}, {transform_indices = @transform_3, window_bounds = array<i64: 1, 8, 384>}]} {
    %c0 = arith.constant 0 : index
    %c0_0 = arith.constant 0 : index
    %0 = vector.load %arg4[%c0, %c0_0] : memref<8x1xf32, #tpu.memory_space<vmem>>, vector<8x1xf32>
    %c0_1 = arith.constant 0 : index
    %c0_2 = arith.constant 0 : index
    %c0_3 = arith.constant 0 : index
    %1 = vector.load %arg2[%c0_1, %c0_2, %c0_3] : memref<1x4x422xbf16, #tpu.memory_space<vmem>>, vector<1x4x384xbf16>
    %2 = vector.shape_cast %1 : vector<1x4x384xbf16> to vector<4x384xbf16>
    %c0_4 = arith.constant 0 : index
    %c0_5 = arith.constant 0 : index
    %c0_6 = arith.constant 0 : index
    %3 = vector.load %arg3[%c0_4, %c0_5, %c0_6] : memref<9x8x4xbf16, #tpu.memory_space<vmem>>, vector<1x8x4xbf16>
    %4 = vector.shape_cast %3 : vector<1x8x4xbf16> to vector<8x4xbf16>
    %cst = arith.constant dense<0.000000e+00> : vector<8x384xf32>
    %5 = tpu.matmul %4, %2, %cst {dimension_numbers = #tpu.dot_dimension_numbers<[1], [0], [0], [1], [0, 0, 1, 1], [], []>} : vector<8x4xbf16>, vector<4x384xbf16>, vector<8x384xf32> -> vector<8x384xf32>
    %c0_7 = arith.constant 0 : index
    %c0_8 = arith.constant 0 : index
    %c1 = arith.constant 1 : index
    %6 = vector.load %arg2[%c0_7, %c0_8, %c1] : memref<1x4x422xbf16, #tpu.memory_space<vmem>>, vector<1x4x384xbf16>
    %7 = vector.shape_cast %6 : vector<1x4x384xbf16> to vector<4x384xbf16>
    %c1_9 = arith.constant 1 : index
    %c0_10 = arith.constant 0 : index
    %c0_11 = arith.constant 0 : index
    %8 = vector.load %arg3[%c1_9, %c0_10, %c0_11] : memref<9x8x4xbf16, #tpu.memory_space<vmem>>, vector<1x8x4xbf16>
    %9 = vector.shape_cast %8 : vector<1x8x4xbf16> to vector<8x4xbf16>
    %cst_12 = arith.constant dense<0.000000e+00> : vector<8x384xf32>
    %10 = tpu.matmul %9, %7, %cst_12 {dimension_numbers = #tpu.dot_dimension_numbers<[1], [0], [0], [1], [0, 0, 1, 1], [], []>} : vector<8x4xbf16>, vector<4x384xbf16>, vector<8x384xf32> -> vector<8x384xf32>
    %11 = arith.addf %5, %10 : vector<8x384xf32>
    %c0_13 = arith.constant 0 : index
    %c0_14 = arith.constant 0 : index
    %c2 = arith.constant 2 : index
    %12 = vector.load %arg2[%c0_13, %c0_14, %c2] : memref<1x4x422xbf16, #tpu.memory_space<vmem>>, vector<1x4x384xbf16>
    %13 = vector.shape_cast %12 : vector<1x4x384xbf16> to vector<4x384xbf16>
    %c2_15 = arith.constant 2 : index
    %c0_16 = arith.constant 0 : index
    %c0_17 = arith.constant 0 : index
    %14 = vector.load %arg3[%c2_15, %c0_16, %c0_17] : memref<9x8x4xbf16, #tpu.memory_space<vmem>>, vector<1x8x4xbf16>
    %15 = vector.shape_cast %14 : vector<1x8x4xbf16> to vector<8x4xbf16>
    %cst_18 = arith.constant dense<0.000000e+00> : vector<8x384xf32>
    %16 = tpu.matmul %15, %13, %cst_18 {dimension_numbers = #tpu.dot_dimension_numbers<[1], [0], [0], [1], [0, 0, 1, 1], [], []>} : vector<8x4xbf16>, vector<4x384xbf16>, vector<8x384xf32> -> vector<8x384xf32>
    %17 = arith.addf %11, %16 : vector<8x384xf32>
    %c0_19 = arith.constant 0 : index
    %c0_20 = arith.constant 0 : index
    %c18 = arith.constant 18 : index
    %18 = vector.load %arg2[%c0_19, %c0_20, %c18] : memref<1x4x422xbf16, #tpu.memory_space<vmem>>, vector<1x4x384xbf16>
    %19 = vector.shape_cast %18 : vector<1x4x384xbf16> to vector<4x384xbf16>
    %c3 = arith.constant 3 : index
    %c0_21 = arith.constant 0 : index
    %c0_22 = arith.constant 0 : index
    %20 = vector.load %arg3[%c3, %c0_21, %c0_22] : memref<9x8x4xbf16, #tpu.memory_space<vmem>>, vector<1x8x4xbf16>
    %21 = vector.shape_cast %20 : vector<1x8x4xbf16> to vector<8x4xbf16>
    %cst_23 = arith.constant dense<0.000000e+00> : vector<8x384xf32>
    %22 = tpu.matmul %21, %19, %cst_23 {dimension_numbers = #tpu.dot_dimension_numbers<[1], [0], [0], [1], [0, 0, 1, 1], [], []>} : vector<8x4xbf16>, vector<4x384xbf16>, vector<8x384xf32> -> vector<8x384xf32>
    %23 = arith.addf %17, %22 : vector<8x384xf32>
    %c0_24 = arith.constant 0 : index
    %c0_25 = arith.constant 0 : index
    %c19 = arith.constant 19 : index
    %24 = vector.load %arg2[%c0_24, %c0_25, %c19] : memref<1x4x422xbf16, #tpu.memory_space<vmem>>, vector<1x4x384xbf16>
    %25 = vector.shape_cast %24 : vector<1x4x384xbf16> to vector<4x384xbf16>
    %c4 = arith.constant 4 : index
    %c0_26 = arith.constant 0 : index
    %c0_27 = arith.constant 0 : index
    %26 = vector.load %arg3[%c4, %c0_26, %c0_27] : memref<9x8x4xbf16, #tpu.memory_space<vmem>>, vector<1x8x4xbf16>
    %27 = vector.shape_cast %26 : vector<1x8x4xbf16> to vector<8x4xbf16>
    %cst_28 = arith.constant dense<0.000000e+00> : vector<8x384xf32>
    %28 = tpu.matmul %27, %25, %cst_28 {dimension_numbers = #tpu.dot_dimension_numbers<[1], [0], [0], [1], [0, 0, 1, 1], [], []>} : vector<8x4xbf16>, vector<4x384xbf16>, vector<8x384xf32> -> vector<8x384xf32>
    %29 = arith.addf %23, %28 : vector<8x384xf32>
    %c0_29 = arith.constant 0 : index
    %c0_30 = arith.constant 0 : index
    %c20 = arith.constant 20 : index
    %30 = vector.load %arg2[%c0_29, %c0_30, %c20] : memref<1x4x422xbf16, #tpu.memory_space<vmem>>, vector<1x4x384xbf16>
    %31 = vector.shape_cast %30 : vector<1x4x384xbf16> to vector<4x384xbf16>
    %c5 = arith.constant 5 : index
    %c0_31 = arith.constant 0 : index
    %c0_32 = arith.constant 0 : index
    %32 = vector.load %arg3[%c5, %c0_31, %c0_32] : memref<9x8x4xbf16, #tpu.memory_space<vmem>>, vector<1x8x4xbf16>
    %33 = vector.shape_cast %32 : vector<1x8x4xbf16> to vector<8x4xbf16>
    %cst_33 = arith.constant dense<0.000000e+00> : vector<8x384xf32>
    %34 = tpu.matmul %33, %31, %cst_33 {dimension_numbers = #tpu.dot_dimension_numbers<[1], [0], [0], [1], [0, 0, 1, 1], [], []>} : vector<8x4xbf16>, vector<4x384xbf16>, vector<8x384xf32> -> vector<8x384xf32>
    %35 = arith.addf %29, %34 : vector<8x384xf32>
    %c0_34 = arith.constant 0 : index
    %c0_35 = arith.constant 0 : index
    %c36 = arith.constant 36 : index
    %36 = vector.load %arg2[%c0_34, %c0_35, %c36] : memref<1x4x422xbf16, #tpu.memory_space<vmem>>, vector<1x4x384xbf16>
    %37 = vector.shape_cast %36 : vector<1x4x384xbf16> to vector<4x384xbf16>
    %c6 = arith.constant 6 : index
    %c0_36 = arith.constant 0 : index
    %c0_37 = arith.constant 0 : index
    %38 = vector.load %arg3[%c6, %c0_36, %c0_37] : memref<9x8x4xbf16, #tpu.memory_space<vmem>>, vector<1x8x4xbf16>
    %39 = vector.shape_cast %38 : vector<1x8x4xbf16> to vector<8x4xbf16>
    %cst_38 = arith.constant dense<0.000000e+00> : vector<8x384xf32>
    %40 = tpu.matmul %39, %37, %cst_38 {dimension_numbers = #tpu.dot_dimension_numbers<[1], [0], [0], [1], [0, 0, 1, 1], [], []>} : vector<8x4xbf16>, vector<4x384xbf16>, vector<8x384xf32> -> vector<8x384xf32>
    %41 = arith.addf %35, %40 : vector<8x384xf32>
    %c0_39 = arith.constant 0 : index
    %c0_40 = arith.constant 0 : index
    %c37 = arith.constant 37 : index
    %42 = vector.load %arg2[%c0_39, %c0_40, %c37] : memref<1x4x422xbf16, #tpu.memory_space<vmem>>, vector<1x4x384xbf16>
    %43 = vector.shape_cast %42 : vector<1x4x384xbf16> to vector<4x384xbf16>
    %c7 = arith.constant 7 : index
    %c0_41 = arith.constant 0 : index
    %c0_42 = arith.constant 0 : index
    %44 = vector.load %arg3[%c7, %c0_41, %c0_42] : memref<9x8x4xbf16, #tpu.memory_space<vmem>>, vector<1x8x4xbf16>
    %45 = vector.shape_cast %44 : vector<1x8x4xbf16> to vector<8x4xbf16>
    %cst_43 = arith.constant dense<0.000000e+00> : vector<8x384xf32>
    %46 = tpu.matmul %45, %43, %cst_43 {dimension_numbers = #tpu.dot_dimension_numbers<[1], [0], [0], [1], [0, 0, 1, 1], [], []>} : vector<8x4xbf16>, vector<4x384xbf16>, vector<8x384xf32> -> vector<8x384xf32>
    %47 = arith.addf %41, %46 : vector<8x384xf32>
    %c0_44 = arith.constant 0 : index
    %c0_45 = arith.constant 0 : index
    %c38 = arith.constant 38 : index
    %48 = vector.load %arg2[%c0_44, %c0_45, %c38] : memref<1x4x422xbf16, #tpu.memory_space<vmem>>, vector<1x4x384xbf16>
    %49 = vector.shape_cast %48 : vector<1x4x384xbf16> to vector<4x384xbf16>
    %c8 = arith.constant 8 : index
    %c0_46 = arith.constant 0 : index
    %c0_47 = arith.constant 0 : index
    %50 = vector.load %arg3[%c8, %c0_46, %c0_47] : memref<9x8x4xbf16, #tpu.memory_space<vmem>>, vector<1x8x4xbf16>
    %51 = vector.shape_cast %50 : vector<1x8x4xbf16> to vector<8x4xbf16>
    %cst_48 = arith.constant dense<0.000000e+00> : vector<8x384xf32>
    %52 = tpu.matmul %51, %49, %cst_48 {dimension_numbers = #tpu.dot_dimension_numbers<[1], [0], [0], [1], [0, 0, 1, 1], [], []>} : vector<8x4xbf16>, vector<4x384xbf16>, vector<8x384xf32> -> vector<8x384xf32>
    %53 = arith.addf %47, %52 : vector<8x384xf32>
    %54 = vector.broadcast %0 : vector<8x1xf32> to vector<8x384xf32>
    %55 = arith.addf %53, %54 : vector<8x384xf32>
    %c0_49 = arith.constant 0 : index
    %c0_50 = arith.constant 0 : index
    %c0_51 = arith.constant 0 : index
    %56 = vector.load %arg5[%c0_49, %c0_50, %c0_51] : memref<1x8x384xf32, #tpu.memory_space<vmem>>, vector<1x8x384xf32>
    %57 = vector.shape_cast %56 : vector<1x8x384xf32> to vector<8x384xf32>
    %58 = vector.shape_cast %55 : vector<8x384xf32> to vector<1x8x384xf32>
    tpu.vector_store %arg5[%c0_49, %c0_50, %c0_51], %58 {strides = array<i32>} : memref<1x8x384xf32, #tpu.memory_space<vmem>>, vector<1x8x384xf32>,
    return
  }
  func.func @transform_0(%arg0: i32, %arg1: i32) -> (i32, i32, i32) {
    %c0_i32 = arith.constant 0 : i32
    %c0_i32_0 = arith.constant 0 : i32
    %c0_i32_1 = arith.constant 0 : i32
    return %arg0, %c0_i32, %c0_i32_0 : i32, i32, i32
  }
  func.func @transform_1(%arg0: i32, %arg1: i32) -> (i32, i32, i32) {
    %c0_i32 = arith.constant 0 : i32
    %c0_i32_0 = arith.constant 0 : i32
    %c0_i32_1 = arith.constant 0 : i32
    return %c0_i32, %arg1, %c0_i32_0 : i32, i32, i32
  }
  func.func @transform_2(%arg0: i32, %arg1: i32) -> (i32, i32) {
    %c0_i32 = arith.constant 0 : i32
    %c0_i32_0 = arith.constant 0 : i32
    return %arg1, %c0_i32 : i32, i32
  }
  func.func @transform_3(%arg0: i32, %arg1: i32) -> (i32, i32, i32) {
    %c0_i32 = arith.constant 0 : i32
    %c0_i32_0 = arith.constant 0 : i32
    return %arg0, %arg1, %c0_i32 : i32, i32, i32
  }
}

</mosaic_0001>

<llo_original>
// kernel: a_call__.1
$region0: #{a_call__.1}
  #allocation0 [shape = 'u32[]', space=smem, size = 0x4, offset = 0x4, fixed_abs, tag = 'smem constant byte address 0x4 - core index']
  #allocation1 [shape = 'u32[72,128]{1,0:T(1,128)}', space=vmem, size = 0x9000, scoped, tag = 'internal scratch']
  %s0 = inlined_call_operand.vmem [shape: bf16[2,4,422], index: 0, kind: input, shape index: {}]
  %s1 = inlined_call_operand.vmem [shape: bf16[9,8,4], index: 1, kind: input, shape index: {}]
  %s2 = inlined_call_operand.vmem [shape: f32[8,1], index: 2, kind: input, shape index: {}]
  %s3 = inlined_call_operand.vmem [shape: f32[2,8,384], index: 3, kind: output, shape index: {}]
  %s4 = sld [smem:[#allocation0]]
  $region45: #{a_call__.1} parent=0
    _
  %s6 = ssub.s32 1, %s4
  %s7 = scalar_select 0, %s6, %s4
  loop: start=0, step=1, limit=4
  $region2: #{a_call__.1} parent=0 // loop_pre_header
    _
  $region3: #{a_call__.1} parent=0 // loop_header
    %s9 = sphi 0, %s13
    %p10 = scmp.ge.s32.totalorder %s9, 4
    %s16 = sphi 0, %s28
    %s17 = sphi 0, %s24
    %s18 = sphi 0, %s16
    %s19 = sphi 0, %s17
    %s20 = sphi 0, %s18
    %s21 = sphi 0, %s19
    %s31 = sphi 0, %s33
    %s34 = sphi 0, %s31
    %s35 = sphi 0, %s34
    %s51 = sphi 0, %s35
    %s57 = sphi 0, %s59
    %s60 = sphi 0, %s57
    %s61 = sphi 0, %s60
    %s77 = sphi 0, %s61
    %s83 = sphi 0, %s85
    %s86 = sphi 0, %s83
    %s87 = sphi 0, %s86
    %s103 = sphi 0, %s87
    %s111 = sphi 0, %s113
    %s114 = sphi 0, %s111
    %s115 = sphi 0, %s114
    %s131 = sphi 0, %s115
  $region4: #{a_call__.1} parent=0 // loop_header_branch
    %12 = sbr.rel (%p10) target = $region8
  $region5: #{a_call__.1} parent=0 // loop_body
    %s14 = ssub.s32 %s9, 1
    %s15 = ssub.s32 %s9, 2
    %s22 = sadd.s32 1, %s17
    %p23 = scmp.ge.s32.totalorder %s22, 1
    %s24 = scalar_select %p23, 0, %s22
    %s25 = sadd.s32 1, %s16
    %s26 = scalar_select %p23, %s25, %s16
    %p27 = scmp.ge.s32.totalorder %s26, 2
    %s28 = scalar_select %p27, 0, %s26
    %s29 = ssub.s32 %s16, %s28
    %p30 = scmp.eq.s32.totalorder %s29, 0
    %s32 = sadd.s32 %s31, 1
    %s33 = scalar_select %p30, %s31, %s32
    %p36 = pneg %p30
    %p37 = scmp.eq.s32.totalorder %s9, 1
    %p38 = por %p36, %p37
    %p39 = scmp.ne.s32.totalorder %s31, %s34
    %p40 = scmp.eq.s32.totalorder %s9, 0
    %p41 = por %p39, %p40
    %p42 = scmp.ne.s32.totalorder %s31, %s34
    %p43 = scmp.eq.s32.totalorder %s14, 1
    %p44 = por %p42, %p43
    %p45 = scmp.ne.s32.totalorder %s34, %s35
    %p46 = scmp.eq.s32.totalorder %s14, 0
    %p47 = por %p45, %p46
    %p48 = scmp.ne.s32.totalorder %s34, %s35
    %p49 = scmp.eq.s32.totalorder %s15, 1
    %p50 = por %p48, %p49
    %p52 = scmp.ne.s32.totalorder %s35, %s51
    %p53 = scmp.eq.s32.totalorder %s15, 0
    %p54 = por %p52, %p53
    %s55 = ssub.s32 %s17, %s24
    %p56 = scmp.eq.s32.totalorder %s55, 0
    %s58 = sadd.s32 %s57, 1
    %s59 = scalar_select %p56, %s57, %s58
    %p62 = pneg %p56
    %p63 = scmp.eq.s32.totalorder %s9, 1
    %p64 = por %p62, %p63
    %p65 = scmp.ne.s32.totalorder %s57, %s60
    %p66 = scmp.eq.s32.totalorder %s9, 0
    %p67 = por %p65, %p66
    %p68 = scmp.ne.s32.totalorder %s57, %s60
    %p69 = scmp.eq.s32.totalorder %s14, 1
    %p70 = por %p68, %p69
    %p71 = scmp.ne.s32.totalorder %s60, %s61
    %p72 = scmp.eq.s32.totalorder %s14, 0
    %p73 = por %p71, %p72
    %p74 = scmp.ne.s32.totalorder %s60, %s61
    %p75 = scmp.eq.s32.totalorder %s15, 1
    %p76 = por %p74, %p75
    %p78 = scmp.ne.s32.totalorder %s61, %s77
    %p79 = scmp.eq.s32.totalorder %s15, 0
    %p80 = por %p78, %p79
    %s81 = ssub.s32 %s17, %s24
    %p82 = scmp.eq.s32.totalorder %s81, 0
    %s84 = sadd.s32 %s83, 1
    %s85 = scalar_select %p82, %s83, %s84
    %p88 = pneg %p82
    %p89 = scmp.eq.s32.totalorder %s9, 1
    %p90 = por %p88, %p89
    %p91 = scmp.ne.s32.totalorder %s83, %s86
    %p92 = scmp.eq.s32.totalorder %s9, 0
    %p93 = por %p91, %p92
    %p94 = scmp.ne.s32.totalorder %s83, %s86
    %p95 = scmp.eq.s32.totalorder %s14, 1
    %p96 = por %p94, %p95
    %p97 = scmp.ne.s32.totalorder %s86, %s87
    %p98 = scmp.eq.s32.totalorder %s14, 0
    %p99 = por %p97, %p98
    %p100 = scmp.ne.s32.totalorder %s86, %s87
    %p101 = scmp.eq.s32.totalorder %s15, 1
    %p102 = por %p100, %p101
    %p104 = scmp.ne.s32.totalorder %s87, %s103
    %p105 = scmp.eq.s32.totalorder %s15, 0
    %p106 = por %p104, %p105
    %s107 = ssub.s32 %s16, %s28
    %s108 = ssub.s32 %s17, %s24
    %s109 = sor.u32 %s107, %s108
    %p110 = scmp.eq.s32.totalorder %s109, 0
    %s112 = sadd.s32 %s111, 1
    %s113 = scalar_select %p110, %s111, %s112
    %p116 = pneg %p110
    %p117 = scmp.eq.s32.totalorder %s9, 1
    %p118 = por %p116, %p117
    %p119 = scmp.ne.s32.totalorder %s111, %s114
    %p120 = scmp.eq.s32.totalorder %s9, 0
    %p121 = por %p119, %p120
    %p122 = scmp.ne.s32.totalorder %s111, %s114
    %p123 = scmp.eq.s32.totalorder %s14, 1
    %p124 = por %p122, %p123
    %p125 = scmp.ne.s32.totalorder %s114, %s115
    %p126 = scmp.eq.s32.totalorder %s14, 0
    %p127 = por %p125, %p126
    %p128 = scmp.ne.s32.totalorder %s114, %s115
    %p129 = scmp.eq.s32.totalorder %s15, 1
    %p130 = por %p128, %p129
    %p132 = scmp.ne.s32.totalorder %s115, %s131
    %p133 = scmp.eq.s32.totalorder %s15, 0
    %p134 = por %p132, %p133
    %p135 = scmp.le.s32.totalorder 1, %s9
    %p136 = scmp.lt.s32.totalorder %s9, 3
    %p137 = pnand %p135, %p136
    %p138 = pneg %p137
    // Predicated region
    $region9: #{a_call__.1} parent=5 // pred_check
      _
    $region10: #{a_call__.1} parent=5 // pred_check_branch
      %140 = sbr.rel (%p137) target = $region12
    $region11: #{a_call__.1} parent=5 // pred_region
      %s141 = ssub.s32 %s9, 1
      // Predicated region
      $region13: #{a_call__.1} parent=11 // pred_check
        %p142 = pneg %p73
      $region14: #{a_call__.1} parent=11 // pred_check_branch
        %144 = sbr.rel (%p142) target = $region16
      $region15: #{a_call__.1} parent=11 // pred_region
        %p145 = scmp.lt.s32.totalorder %s19, 0
        %s146 = scalar_select %p145, %s19, 0
        %s147 = smul.addr %s146, 4
        %s148 = scalar_lea.vmem %s1, %s147
      $region16: #{a_call__.1} parent=11 // pred_fallthru
        _
      // Predicated region
      $region17: #{a_call__.1} parent=11 // pred_check
        %p149 = pneg %p99
      $region18: #{a_call__.1} parent=11 // pred_check_branch
        %151 = sbr.rel (%p149) target = $region20
      $region19: #{a_call__.1} parent=11 // pred_region
        %p152 = scmp.lt.s32.totalorder %s19, 0
        %s153 = scalar_select %p152, %s19, 0
        %s154 = smul.addr %s153, 8
        %s155 = scalar_lea.vmem %s2, %s154
      $region20: #{a_call__.1} parent=11 // pred_fallthru
        _
    $region12: #{a_call__.1} parent=5 // pred_fallthru
      _
    %p156 = scmp.lt.s32.totalorder %s9, 2
    // Predicated region
    $region21: #{a_call__.1} parent=5 // pred_check
      %p157 = pneg %p156
    $region22: #{a_call__.1} parent=5 // pred_check_branch
      %159 = sbr.rel (%p157) target = $region24
    $region23: #{a_call__.1} parent=5 // pred_region
      // Predicated region
      $region25: #{a_call__.1} parent=23 // pred_check
        %p160 = pneg %p41
      $region26: #{a_call__.1} parent=23 // pred_check_branch
        %162 = sbr.rel (%p160) target = $region28
      $region27: #{a_call__.1} parent=23 // pred_region
        %p163 = scmp.lt.s32.totalorder %s16, 1
        %s164 = scalar_select %p163, %s16, 1
        %s165 = smul.addr %s164, 4
        %s166 = smul.addr %s165, 2
        %s167 = scalar_lea.vmem %s0, %s166
      $region28: #{a_call__.1} parent=23 // pred_fallthru
        _
    $region24: #{a_call__.1} parent=5 // pred_fallthru
      _
    %p168 = scmp.le.s32.totalorder 1, %s9
    %p169 = scmp.lt.s32.totalorder %s9, 3
    %p170 = pnand %p168, %p169
    %p171 = pneg %p170
    // Predicated region
    $region29: #{a_call__.1} parent=5 // pred_check
      _
    $region30: #{a_call__.1} parent=5 // pred_check_branch
      %173 = sbr.rel (%p170) target = $region32
    $region31: #{a_call__.1} parent=5 // pred_region
      %s174 = ssub.s32 %s9, 1
      %p175 = scmp.lt.s32.totalorder %s18, 1
      %s176 = scalar_select %p175, %s18, 1
      %s177 = smul.addr %s176, 4
      %s178 = smul.addr %s177, 2
      %s179 = scalar_lea.vmem %s0, %s178
      %p180 = pneg %p47
      %p181 = pneg %p44
      %p182 = scmp.lt.s32.totalorder %s19, 0
      %s183 = scalar_select %p182, %s19, 0
      %s184 = smul.addr %s183, 4
      %s185 = scalar_lea.vmem %s1, %s184
      %p186 = pneg %p73
      %p187 = pneg %p70
      %p188 = scmp.lt.s32.totalorder %s19, 0
      %s189 = scalar_select %p188, %s19, 0
      %s190 = smul.addr %s189, 8
      %s191 = scalar_lea.vmem %s2, %s190
      %p192 = pneg %p99
      %p193 = pneg %p96
      %p194 = pneg %p127
      %p195 = pneg %p124
      %p196 = scmp.lt.s32.totalorder %s18, 1
      %s197 = scalar_select %p196, %s18, 1
      %p198 = scmp.lt.s32.totalorder %s19, 0
      %s199 = scalar_select %p198, %s19, 0
      %s200 = smul.addr %s199, 3
      %s201 = smul.addr %s197, 3
      %s202 = sadd.s32 %s200, %s201
      %s203 = smul.addr %s202, 8
      %s204 = scalar_lea.vmem %s3, %s203
      %p205 = scmp.lt.s32.totalorder %s18, 1
      %s206 = scalar_select %p205, %s18, 1
      %s207 = smul.addr %s206, 4
      %s208 = smul.addr %s207, 2
      %s209 = scalar_lea.vmem %s0, %s208
      %p210 = scmp.lt.s32.totalorder %s19, 0
      %s211 = scalar_select %p210, %s19, 0
      %s212 = smul.addr %s211, 4
      %s213 = scalar_lea.vmem %s1, %s212
      %p214 = scmp.lt.s32.totalorder %s19, 0
      %s215 = scalar_select %p214, %s19, 0
      %s216 = smul.addr %s215, 8
      %s217 = scalar_lea.vmem %s2, %s216
      %p218 = scmp.lt.s32.totalorder %s18, 1
      %s219 = scalar_select %p218, %s18, 1
      %p220 = scmp.lt.s32.totalorder %s19, 0
      %s221 = scalar_select %p220, %s19, 0
      %s222 = smul.addr %s221, 3
      %s223 = smul.addr %s219, 3
      %s224 = sadd.s32 %s222, %s223
      %s225 = smul.addr %s224, 8
      %s226 = scalar_lea.vmem %s3, %s225
      %v228 = vld [vmem:[%s217] sm:$0xff]
      %v229 = vld [vmem:[%s209] sm:$0x3f]
      %v230 = vld [vmem:[%s213] sm:$0xf]
      %v231 = vld [vmem:[%s209] sm:$0xff]
      %s232 = scalar_lea.vmem %s213, 4
      %v233 = vld [vmem:[%s232] sm:$0xf]
      %235 = vst [vmem:[#allocation1] ss:$4 sm:$0xff] %v231
      %v236 = vld.sshfl [vmem:[#allocation1] sm:$0xff pattern:$0x73625140]
      %v238 = vld.sshfl [vmem:[#allocation1 + $0x8] sm:$0xff pattern:$0x73625140]
      %v240 = vld.sshfl [vmem:[#allocation1 + $0x10] sm:$0xff pattern:$0x73625140]
      %v242 = vld.sshfl [vmem:[#allocation1 + $0x18] sm:$0xff pattern:$0x73625140]
      %244 = vrot.lane.b32.xlu0 %v236, 127
      %v245 = vpop.permute.xlu0 %244
      %246 = vrot.lane.b32.xlu0 %v238, 127
      %v247 = vpop.permute.xlu0 %246
      %248 = vrot.lane.b32.xlu0 %v240, 127
      %v249 = vpop.permute.xlu0 %248
      %250 = vrot.lane.b32.xlu0 %v242, 127
      %v251 = vpop.permute.xlu0 %250
      %vm252 = vcmask 1039360
      %v253 = vsel %vm252, %v245, %v247
      %v254 = vsel %vm252, %v247, %v249
      %v255 = vsel %vm252, %v249, %v251
      %vm256 = vcmask 31744
      %v258 = vsel %vm256, %v233, 0
      %vm260 = vcmask 1041408
      %v262 = vsel %vm260, %v253, 0
      %v265 = vsel %vm260, %v254, 0
      %v268 = vsel %vm260, %v255, 0
      %270 = vmatpush.bf16.msra.mxu0 0
      %271 = vmatpush.bf16.msra.mxu0 0
      %272 = vmatpush.bf16.msra.mxu0 0
      %273 = vmatpush.bf16.msra.mxu0 0
      %274 = vmatpush.bf16.msra.mxu0 0
      %275 = vmatpush.bf16.msra.mxu0 0
      %276 = vmatpush.bf16.msra.mxu0 0
      %277 = vmatpush.bf16.msra.mxu0 %v262
      %278 = vmatmul.bf16.gmra.mxu0 %v258
      %v279 = vpop.f32.mrf.mxu0
      %v280 = vadd.f32 0.0, %v279
      %v281 = vpop.f32.mrf.mxu0
      %282 = vdwg.mxu0
      %283 = vmatpush.bf16.msra.mxu0 0
      %284 = vmatpush.bf16.msra.mxu0 0
      %285 = vmatpush.bf16.msra.mxu0 0
      %286 = vmatpush.bf16.msra.mxu0 0
      %287 = vmatpush.bf16.msra.mxu0 0
      %288 = vmatpush.bf16.msra.mxu0 0
      %289 = vmatpush.bf16.msra.mxu0 0
      %290 = vmatpush.bf16.msra.mxu0 %v265
      %291 = vmatmul.bf16.gmra.mxu0 %v258
      %v292 = vpop.f32.mrf.mxu0
      %v293 = vadd.f32 0.0, %v292
      %v294 = vpop.f32.mrf.mxu0
      %295 = vdwg.mxu0
      %296 = vmatpush.bf16.msra.mxu0 0
      %297 = vmatpush.bf16.msra.mxu0 0
      %298 = vmatpush.bf16.msra.mxu0 0
      %299 = vmatpush.bf16.msra.mxu0 0
      %300 = vmatpush.bf16.msra.mxu0 0
      %301 = vmatpush.bf16.msra.mxu0 0
      %302 = vmatpush.bf16.msra.mxu0 0
      %303 = vmatpush.bf16.msra.mxu0 %v268
      %304 = vmatmul.bf16.gmra.mxu0 %v258
      %v305 = vpop.f32.mrf.mxu0
      %v306 = vadd.f32 0.0, %v305
      %v307 = vpop.f32.mrf.mxu0
      %308 = vdwg.mxu0
      %310 = vst [vmem:[#allocation1] ss:$4 sm:$0xff] %v229
      %v311 = vld.sshfl [vmem:[#allocation1] sm:$0xff pattern:$0x73625140]
      %v312 = vld.sshfl [vmem:[#allocation1 + $0x8] sm:$0xff pattern:$0x73625140]
      %v313 = vld.sshfl [vmem:[#allocation1 + $0x10] sm:$0xff pattern:$0x73625140]
      %v315 = vsel %vm256, %v230, 0
      %v317 = vsel %vm260, %v311, 0
      %v319 = vsel %vm260, %v312, 0
      %v321 = vsel %vm260, %v313, 0
      %323 = vmatpush.bf16.msra.mxu0 0
      %324 = vmatpush.bf16.msra.mxu0 0
      %325 = vmatpush.bf16.msra.mxu0 0
      %326 = vmatpush.bf16.msra.mxu0 0
      %327 = vmatpush.bf16.msra.mxu0 0
      %328 = vmatpush.bf16.msra.mxu0 0
      %329 = vmatpush.bf16.msra.mxu0 0
      %330 = vmatpush.bf16.msra.mxu0 %v317
      %331 = vmatmul.bf16.gmra.mxu0 %v315
      %v332 = vpop.f32.mrf.mxu0
      %v333 = vadd.f32 %v280, %v332
      %v334 = vpop.f32.mrf.mxu0
      %335 = vdwg.mxu0
      %336 = vmatpush.bf16.msra.mxu0 0
      %337 = vmatpush.bf16.msra.mxu0 0
      %338 = vmatpush.bf16.msra.mxu0 0
      %339 = vmatpush.bf16.msra.mxu0 0
      %340 = vmatpush.bf16.msra.mxu0 0
      %341 = vmatpush.bf16.msra.mxu0 0
      %342 = vmatpush.bf16.msra.mxu0 0
      %343 = vmatpush.bf16.msra.mxu0 %v319
      %344 = vmatmul.bf16.gmra.mxu0 %v315
      %v345 = vpop.f32.mrf.mxu0
      %v346 = vadd.f32 %v293, %v345
      %v347 = vpop.f32.mrf.mxu0
      %348 = vdwg.mxu0
      %349 = vmatpush.bf16.msra.mxu0 0
      %350 = vmatpush.bf16.msra.mxu0 0
      %351 = vmatpush.bf16.msra.mxu0 0
      %352 = vmatpush.bf16.msra.mxu0 0
      %353 = vmatpush.bf16.msra.mxu0 0
      %354 = vmatpush.bf16.msra.mxu0 0
      %355 = vmatpush.bf16.msra.mxu0 0
      %356 = vmatpush.bf16.msra.mxu0 %v321
      %357 = vmatmul.bf16.gmra.mxu0 %v315
      %v358 = vpop.f32.mrf.mxu0
      %v359 = vadd.f32 %v306, %v358
      %v360 = vpop.f32.mrf.mxu0
      %361 = vdwg.mxu0
      %v362 = vld [vmem:[%s209] sm:$0xff]
      %s363 = scalar_lea.vmem %s213, 8
      %v364 = vld [vmem:[%s363] sm:$0xf]
      %366 = vst [vmem:[#allocation1] ss:$4 sm:$0xff] %v362
      %v367 = vld.sshfl [vmem:[#allocation1] sm:$0xff pattern:$0x73625140]
      %v369 = vld.sshfl [vmem:[#allocation1 + $0x8] sm:$0xff pattern:$0x73625140]
      %v371 = vld.sshfl [vmem:[#allocation1 + $0x10] sm:$0xff pattern:$0x73625140]
      %v373 = vld.sshfl [vmem:[#allocation1 + $0x18] sm:$0xff pattern:$0x73625140]
      %375 = vrot.lane.b32.xlu0 %v367, 126
      %v376 = vpop.permute.xlu0 %375
      %377 = vrot.lane.b32.xlu0 %v369, 126
      %v378 = vpop.permute.xlu0 %377
      %379 = vrot.lane.b32.xlu0 %v371, 126
      %v380 = vpop.permute.xlu0 %379
      %381 = vrot.lane.b32.xlu0 %v373, 126
      %v382 = vpop.permute.xlu0 %381
      %vm383 = vcmask 1031168
      %v384 = vsel %vm383, %v376, %v378
      %v385 = vsel %vm383, %v378, %v380
      %v386 = vsel %vm383, %v380, %v382
      %v388 = vsel %vm256, %v364, 0
      %v391 = vsel %vm260, %v384, 0
      %v394 = vsel %vm260, %v385, 0
      %v397 = vsel %vm260, %v386, 0
      %399 = vmatpush.bf16.msra.mxu0 0
      %400 = vmatpush.bf16.msra.mxu0 0
      %401 = vmatpush.bf16.msra.mxu0 0
      %402 = vmatpush.bf16.msra.mxu0 0
      %403 = vmatpush.bf16.msra.mxu0 0
      %404 = vmatpush.bf16.msra.mxu0 0
      %405 = vmatpush.bf16.msra.mxu0 0
      %406 = vmatpush.bf16.msra.mxu0 %v391
      %407 = vmatmul.bf16.gmra.mxu0 %v388
      %v408 = vpop.f32.mrf.mxu0
      %v409 = vadd.f32 0.0, %v408
      %v410 = vpop.f32.mrf.mxu0
      %411 = vdwg.mxu0
      %412 = vmatpush.bf16.msra.mxu0 0
      %413 = vmatpush.bf16.msra.mxu0 0
      %414 = vmatpush.bf16.msra.mxu0 0
      %415 = vmatpush.bf16.msra.mxu0 0
      %416 = vmatpush.bf16.msra.mxu0 0
      %417 = vmatpush.bf16.msra.mxu0 0
      %418 = vmatpush.bf16.msra.mxu0 0
      %419 = vmatpush.bf16.msra.mxu0 %v394
      %420 = vmatmul.bf16.gmra.mxu0 %v388
      %v421 = vpop.f32.mrf.mxu0
      %v422 = vadd.f32 0.0, %v421
      %v423 = vpop.f32.mrf.mxu0
      %424 = vdwg.mxu0
      %425 = vmatpush.bf16.msra.mxu0 0
      %426 = vmatpush.bf16.msra.mxu0 0
      %427 = vmatpush.bf16.msra.mxu0 0
      %428 = vmatpush.bf16.msra.mxu0 0
      %429 = vmatpush.bf16.msra.mxu0 0
      %430 = vmatpush.bf16.msra.mxu0 0
      %431 = vmatpush.bf16.msra.mxu0 0
      %432 = vmatpush.bf16.msra.mxu0 %v397
      %433 = vmatmul.bf16.gmra.mxu0 %v388
      %v434 = vpop.f32.mrf.mxu0
      %v435 = vadd.f32 0.0, %v434
      %v436 = vpop.f32.mrf.mxu0
      %437 = vdwg.mxu0
      %v438 = vadd.f32 %v333, %v409
      %v439 = vadd.f32 %v346, %v422
      %v440 = vadd.f32 %v359, %v435
      %v441 = vld [vmem:[%s209] sm:$0xff]
      %s442 = scalar_lea.vmem %s213, 12
      %v443 = vld [vmem:[%s442] sm:$0xf]
      %445 = vst [vmem:[#allocation1] ss:$4 sm:$0xff] %v441
      %v446 = vld.sshfl [vmem:[#allocation1] sm:$0xff pattern:$0x73625140]
      %v448 = vld.sshfl [vmem:[#allocation1 + $0x8] sm:$0xff pattern:$0x73625140]
      %v450 = vld.sshfl [vmem:[#allocation1 + $0x10] sm:$0xff pattern:$0x73625140]
      %v452 = vld.sshfl [vmem:[#allocation1 + $0x18] sm:$0xff pattern:$0x73625140]
      %454 = vrot.lane.b32.xlu0 %v446, 110
      %v455 = vpop.permute.xlu0 %454
      %456 = vrot.lane.b32.xlu0 %v448, 110
      %v457 = vpop.permute.xlu0 %456
      %458 = vrot.lane.b32.xlu0 %v450, 110
      %v459 = vpop.permute.xlu0 %458
      %460 = vrot.lane.b32.xlu0 %v452, 110
      %v461 = vpop.permute.xlu0 %460
      %vm462 = vcmask 900096
      %v463 = vsel %vm462, %v455, %v457
      %v464 = vsel %vm462, %v457, %v459
      %v465 = vsel %vm462, %v459, %v461
      %v467 = vsel %vm256, %v443, 0
      %v470 = vsel %vm260, %v463, 0
      %v473 = vsel %vm260, %v464, 0
      %v476 = vsel %vm260, %v465, 0
      %478 = vmatpush.bf16.msra.mxu0 0
      %479 = vmatpush.bf16.msra.mxu0 0
      %480 = vmatpush.bf16.msra.mxu0 0
      %481 = vmatpush.bf16.msra.mxu0 0
      %482 = vmatpush.bf16.msra.mxu0 0
      %483 = vmatpush.bf16.msra.mxu0 0
      %484 = vmatpush.bf16.msra.mxu0 0
      %485 = vmatpush.bf16.msra.mxu0 %v470
      %486 = vmatmul.bf16.gmra.mxu0 %v467
      %v487 = vpop.f32.mrf.mxu0
      %v488 = vadd.f32 0.0, %v487
      %v489 = vpop.f32.mrf.mxu0
      %490 = vdwg.mxu0
      %491 = vmatpush.bf16.msra.mxu0 0
      %492 = vmatpush.bf16.msra.mxu0 0
      %493 = vmatpush.bf16.msra.mxu0 0
      %494 = vmatpush.bf16.msra.mxu0 0
      %495 = vmatpush.bf16.msra.mxu0 0
      %496 = vmatpush.bf16.msra.mxu0 0
      %497 = vmatpush.bf16.msra.mxu0 0
      %498 = vmatpush.bf16.msra.mxu0 %v473
      %499 = vmatmul.bf16.gmra.mxu0 %v467
      %v500 = vpop.f32.mrf.mxu0
      %v501 = vadd.f32 0.0, %v500
      %v502 = vpop.f32.mrf.mxu0
      %503 = vdwg.mxu0
      %504 = vmatpush.bf16.msra.mxu0 0
      %505 = vmatpush.bf16.msra.mxu0 0
      %506 = vmatpush.bf16.msra.mxu0 0
      %507 = vmatpush.bf16.msra.mxu0 0
      %508 = vmatpush.bf16.msra.mxu0 0
      %509 = vmatpush.bf16.msra.mxu0 0
      %510 = vmatpush.bf16.msra.mxu0 0
      %511 = vmatpush.bf16.msra.mxu0 %v476
      %512 = vmatmul.bf16.gmra.mxu0 %v467
      %v513 = vpop.f32.mrf.mxu0
      %v514 = vadd.f32 0.0, %v513
      %v515 = vpop.f32.mrf.mxu0
      %516 = vdwg.mxu0
      %v517 = vadd.f32 %v438, %v488
      %v518 = vadd.f32 %v439, %v501
      %v519 = vadd.f32 %v440, %v514
      %v520 = vld [vmem:[%s209] sm:$0xff]
      %s521 = scalar_lea.vmem %s213, 16
      %v522 = vld [vmem:[%s521] sm:$0xf]
      %524 = vst [vmem:[#allocation1] ss:$4 sm:$0xff] %v520
      %v525 = vld.sshfl [vmem:[#allocation1] sm:$0xff pattern:$0x73625140]
      %v527 = vld.sshfl [vmem:[#allocation1 + $0x8] sm:$0xff pattern:$0x73625140]
      %v529 = vld.sshfl [vmem:[#allocation1 + $0x10] sm:$0xff pattern:$0x73625140]
      %v531 = vld.sshfl [vmem:[#allocation1 + $0x18] sm:$0xff pattern:$0x73625140]
      %533 = vrot.lane.b32.xlu0 %v525, 109
      %v534 = vpop.permute.xlu0 %533
      %535 = vrot.lane.b32.xlu0 %v527, 109
      %v536 = vpop.permute.xlu0 %535
      %537 = vrot.lane.b32.xlu0 %v529, 109
      %v538 = vpop.permute.xlu0 %537
      %539 = vrot.lane.b32.xlu0 %v531, 109
      %v540 = vpop.permute.xlu0 %539
      %vm541 = vcmask 891904
      %v542 = vsel %vm541, %v534, %v536
      %v543 = vsel %vm541, %v536, %v538
      %v544 = vsel %vm541, %v538, %v540
      %v546 = vsel %vm256, %v522, 0
      %v549 = vsel %vm260, %v542, 0
      %v552 = vsel %vm260, %v543, 0
      %v555 = vsel %vm260, %v544, 0
      %557 = vmatpush.bf16.msra.mxu0 0
      %558 = vmatpush.bf16.msra.mxu0 0
      %559 = vmatpush.bf16.msra.mxu0 0
      %560 = vmatpush.bf16.msra.mxu0 0
      %561 = vmatpush.bf16.msra.mxu0 0
      %562 = vmatpush.bf16.msra.mxu0 0
      %563 = vmatpush.bf16.msra.mxu0 0
      %564 = vmatpush.bf16.msra.mxu0 %v549
      %565 = vmatmul.bf16.gmra.mxu0 %v546
      %v566 = vpop.f32.mrf.mxu0
      %v567 = vadd.f32 0.0, %v566
      %v568 = vpop.f32.mrf.mxu0
      %569 = vdwg.mxu0
      %570 = vmatpush.bf16.msra.mxu0 0
      %571 = vmatpush.bf16.msra.mxu0 0
      %572 = vmatpush.bf16.msra.mxu0 0
      %573 = vmatpush.bf16.msra.mxu0 0
      %574 = vmatpush.bf16.msra.mxu0 0
      %575 = vmatpush.bf16.msra.mxu0 0
      %576 = vmatpush.bf16.msra.mxu0 0
      %577 = vmatpush.bf16.msra.mxu0 %v552
      %578 = vmatmul.bf16.gmra.mxu0 %v546
      %v579 = vpop.f32.mrf.mxu0
      %v580 = vadd.f32 0.0, %v579
      %v581 = vpop.f32.mrf.mxu0
      %582 = vdwg.mxu0
      %583 = vmatpush.bf16.msra.mxu0 0
      %584 = vmatpush.bf16.msra.mxu0 0
      %585 = vmatpush.bf16.msra.mxu0 0
      %586 = vmatpush.bf16.msra.mxu0 0
      %587 = vmatpush.bf16.msra.mxu0 0
      %588 = vmatpush.bf16.msra.mxu0 0
      %589 = vmatpush.bf16.msra.mxu0 0
      %590 = vmatpush.bf16.msra.mxu0 %v555
      %591 = vmatmul.bf16.gmra.mxu0 %v546
      %v592 = vpop.f32.mrf.mxu0
      %v593 = vadd.f32 0.0, %v592
      %v594 = vpop.f32.mrf.mxu0
      %595 = vdwg.mxu0
      %v596 = vadd.f32 %v517, %v567
      %v597 = vadd.f32 %v518, %v580
      %v598 = vadd.f32 %v519, %v593
      %v599 = vld [vmem:[%s209] sm:$0xff]
      %s600 = scalar_lea.vmem %s213, 20
      %v601 = vld [vmem:[%s600] sm:$0xf]
      %603 = vst [vmem:[#allocation1] ss:$4 sm:$0xff] %v599
      %v604 = vld.sshfl [vmem:[#allocation1] sm:$0xff pattern:$0x73625140]
      %v606 = vld.sshfl [vmem:[#allocation1 + $0x8] sm:$0xff pattern:$0x73625140]
      %v608 = vld.sshfl [vmem:[#allocation1 + $0x10] sm:$0xff pattern:$0x73625140]
      %v610 = vld.sshfl [vmem:[#allocation1 + $0x18] sm:$0xff pattern:$0x73625140]
      %612 = vrot.lane.b32.xlu0 %v604, 108
      %v613 = vpop.permute.xlu0 %612
      %614 = vrot.lane.b32.xlu0 %v606, 108
      %v615 = vpop.permute.xlu0 %614
      %616 = vrot.lane.b32.xlu0 %v608, 108
      %v617 = vpop.permute.xlu0 %616
      %618 = vrot.lane.b32.xlu0 %v610, 108
      %v619 = vpop.permute.xlu0 %618
      %vm620 = vcmask 883712
      %v621 = vsel %vm620, %v613, %v615
      %v622 = vsel %vm620, %v615, %v617
      %v623 = vsel %vm620, %v617, %v619
      %v625 = vsel %vm256, %v601, 0
      %v628 = vsel %vm260, %v621, 0
      %v631 = vsel %vm260, %v622, 0
      %v634 = vsel %vm260, %v623, 0
      %636 = vmatpush.bf16.msra.mxu0 0
      %637 = vmatpush.bf16.msra.mxu0 0
      %638 = vmatpush.bf16.msra.mxu0 0
      %639 = vmatpush.bf16.msra.mxu0 0
      %640 = vmatpush.bf16.msra.mxu0 0
      %641 = vmatpush.bf16.msra.mxu0 0
      %642 = vmatpush.bf16.msra.mxu0 0
      %643 = vmatpush.bf16.msra.mxu0 %v628
      %644 = vmatmul.bf16.gmra.mxu0 %v625
      %v645 = vpop.f32.mrf.mxu0
      %v646 = vadd.f32 0.0, %v645
      %v647 = vpop.f32.mrf.mxu0
      %648 = vdwg.mxu0
      %649 = vmatpush.bf16.msra.mxu0 0
      %650 = vmatpush.bf16.msra.mxu0 0
      %651 = vmatpush.bf16.msra.mxu0 0
      %652 = vmatpush.bf16.msra.mxu0 0
      %653 = vmatpush.bf16.msra.mxu0 0
      %654 = vmatpush.bf16.msra.mxu0 0
      %655 = vmatpush.bf16.msra.mxu0 0
      %656 = vmatpush.bf16.msra.mxu0 %v631
      %657 = vmatmul.bf16.gmra.mxu0 %v625
      %v658 = vpop.f32.mrf.mxu0
      %v659 = vadd.f32 0.0, %v658
      %v660 = vpop.f32.mrf.mxu0
      %661 = vdwg.mxu0
      %662 = vmatpush.bf16.msra.mxu0 0
      %663 = vmatpush.bf16.msra.mxu0 0
      %664 = vmatpush.bf16.msra.mxu0 0
      %665 = vmatpush.bf16.msra.mxu0 0
      %666 = vmatpush.bf16.msra.mxu0 0
      %667 = vmatpush.bf16.msra.mxu0 0
      %668 = vmatpush.bf16.msra.mxu0 0
      %669 = vmatpush.bf16.msra.mxu0 %v634
      %670 = vmatmul.bf16.gmra.mxu0 %v625
      %v671 = vpop.f32.mrf.mxu0
      %v672 = vadd.f32 0.0, %v671
      %v673 = vpop.f32.mrf.mxu0
      %674 = vdwg.mxu0
      %v675 = vadd.f32 %v596, %v646
      %v676 = vadd.f32 %v597, %v659
      %v677 = vadd.f32 %v598, %v672
      %v678 = vld [vmem:[%s209] sm:$0xff]
      %s679 = scalar_lea.vmem %s213, 24
      %v680 = vld [vmem:[%s679] sm:$0xf]
      %682 = vst [vmem:[#allocation1] ss:$4 sm:$0xff] %v678
      %v683 = vld.sshfl [vmem:[#allocation1] sm:$0xff pattern:$0x73625140]
      %v685 = vld.sshfl [vmem:[#allocation1 + $0x8] sm:$0xff pattern:$0x73625140]
      %v687 = vld.sshfl [vmem:[#allocation1 + $0x10] sm:$0xff pattern:$0x73625140]
      %v689 = vld.sshfl [vmem:[#allocation1 + $0x18] sm:$0xff pattern:$0x73625140]
      %691 = vrot.lane.b32.xlu0 %v683, 92
      %v692 = vpop.permute.xlu0 %691
      %693 = vrot.lane.b32.xlu0 %v685, 92
      %v694 = vpop.permute.xlu0 %693
      %695 = vrot.lane.b32.xlu0 %v687, 92
      %v696 = vpop.permute.xlu0 %695
      %697 = vrot.lane.b32.xlu0 %v689, 92
      %v698 = vpop.permute.xlu0 %697
      %vm699 = vcmask 752640
      %v700 = vsel %vm699, %v692, %v694
      %v701 = vsel %vm699, %v694, %v696
      %v702 = vsel %vm699, %v696, %v698
      %v704 = vsel %vm256, %v680, 0
      %v707 = vsel %vm260, %v700, 0
      %v710 = vsel %vm260, %v701, 0
      %v713 = vsel %vm260, %v702, 0
      %715 = vmatpush.bf16.msra.mxu0 0
      %716 = vmatpush.bf16.msra.mxu0 0
      %717 = vmatpush.bf16.msra.mxu0 0
      %718 = vmatpush.bf16.msra.mxu0 0
      %719 = vmatpush.bf16.msra.mxu0 0
      %720 = vmatpush.bf16.msra.mxu0 0
      %721 = vmatpush.bf16.msra.mxu0 0
      %722 = vmatpush.bf16.msra.mxu0 %v707
      %723 = vmatmul.bf16.gmra.mxu0 %v704
      %v724 = vpop.f32.mrf.mxu0
      %v725 = vadd.f32 0.0, %v724
      %v726 = vpop.f32.mrf.mxu0
      %727 = vdwg.mxu0
      %728 = vmatpush.bf16.msra.mxu0 0
      %729 = vmatpush.bf16.msra.mxu0 0
      %730 = vmatpush.bf16.msra.mxu0 0
      %731 = vmatpush.bf16.msra.mxu0 0
      %732 = vmatpush.bf16.msra.mxu0 0
      %733 = vmatpush.bf16.msra.mxu0 0
      %734 = vmatpush.bf16.msra.mxu0 0
      %735 = vmatpush.bf16.msra.mxu0 %v710
      %736 = vmatmul.bf16.gmra.mxu0 %v704
      %v737 = vpop.f32.mrf.mxu0
      %v738 = vadd.f32 0.0, %v737
      %v739 = vpop.f32.mrf.mxu0
      %740 = vdwg.mxu0
      %741 = vmatpush.bf16.msra.mxu0 0
      %742 = vmatpush.bf16.msra.mxu0 0
      %743 = vmatpush.bf16.msra.mxu0 0
      %744 = vmatpush.bf16.msra.mxu0 0
      %745 = vmatpush.bf16.msra.mxu0 0
      %746 = vmatpush.bf16.msra.mxu0 0
      %747 = vmatpush.bf16.msra.mxu0 0
      %748 = vmatpush.bf16.msra.mxu0 %v713
      %749 = vmatmul.bf16.gmra.mxu0 %v704
      %v750 = vpop.f32.mrf.mxu0
      %v751 = vadd.f32 0.0, %v750
      %v752 = vpop.f32.mrf.mxu0
      %753 = vdwg.mxu0
      %v754 = vadd.f32 %v675, %v725
      %v755 = vadd.f32 %v676, %v738
      %v756 = vadd.f32 %v677, %v751
      %v757 = vld [vmem:[%s209] sm:$0xff]
      %s758 = scalar_lea.vmem %s213, 28
      %v759 = vld [vmem:[%s758] sm:$0xf]
      %761 = vst [vmem:[#allocation1] ss:$4 sm:$0xff] %v757
      %v762 = vld.sshfl [vmem:[#allocation1] sm:$0xff pattern:$0x73625140]
      %v764 = vld.sshfl [vmem:[#allocation1 + $0x8] sm:$0xff pattern:$0x73625140]
      %v766 = vld.sshfl [vmem:[#allocation1 + $0x10] sm:$0xff pattern:$0x73625140]
      %v768 = vld.sshfl [vmem:[#allocation1 + $0x18] sm:$0xff pattern:$0x73625140]
      %770 = vrot.lane.b32.xlu0 %v762, 91
      %v771 = vpop.permute.xlu0 %770
      %772 = vrot.lane.b32.xlu0 %v764, 91
      %v773 = vpop.permute.xlu0 %772
      %774 = vrot.lane.b32.xlu0 %v766, 91
      %v775 = vpop.permute.xlu0 %774
      %776 = vrot.lane.b32.xlu0 %v768, 91
      %v777 = vpop.permute.xlu0 %776
      %vm778 = vcmask 744448
      %v779 = vsel %vm778, %v771, %v773
      %v780 = vsel %vm778, %v773, %v775
      %v781 = vsel %vm778, %v775, %v777
      %v783 = vsel %vm256, %v759, 0
      %v786 = vsel %vm260, %v779, 0
      %v789 = vsel %vm260, %v780, 0
      %v792 = vsel %vm260, %v781, 0
      %794 = vmatpush.bf16.msra.mxu0 0
      %795 = vmatpush.bf16.msra.mxu0 0
      %796 = vmatpush.bf16.msra.mxu0 0
      %797 = vmatpush.bf16.msra.mxu0 0
      %798 = vmatpush.bf16.msra.mxu0 0
      %799 = vmatpush.bf16.msra.mxu0 0
      %800 = vmatpush.bf16.msra.mxu0 0
      %801 = vmatpush.bf16.msra.mxu0 %v786
      %802 = vmatmul.bf16.gmra.mxu0 %v783
      %v803 = vpop.f32.mrf.mxu0
      %v804 = vadd.f32 0.0, %v803
      %v805 = vpop.f32.mrf.mxu0
      %806 = vdwg.mxu0
      %807 = vmatpush.bf16.msra.mxu0 0
      %808 = vmatpush.bf16.msra.mxu0 0
      %809 = vmatpush.bf16.msra.mxu0 0
      %810 = vmatpush.bf16.msra.mxu0 0
      %811 = vmatpush.bf16.msra.mxu0 0
      %812 = vmatpush.bf16.msra.mxu0 0
      %813 = vmatpush.bf16.msra.mxu0 0
      %814 = vmatpush.bf16.msra.mxu0 %v789
      %815 = vmatmul.bf16.gmra.mxu0 %v783
      %v816 = vpop.f32.mrf.mxu0
      %v817 = vadd.f32 0.0, %v816
      %v818 = vpop.f32.mrf.mxu0
      %819 = vdwg.mxu0
      %820 = vmatpush.bf16.msra.mxu0 0
      %821 = vmatpush.bf16.msra.mxu0 0
      %822 = vmatpush.bf16.msra.mxu0 0
      %823 = vmatpush.bf16.msra.mxu0 0
      %824 = vmatpush.bf16.msra.mxu0 0
      %825 = vmatpush.bf16.msra.mxu0 0
      %826 = vmatpush.bf16.msra.mxu0 0
      %827 = vmatpush.bf16.msra.mxu0 %v792
      %828 = vmatmul.bf16.gmra.mxu0 %v783
      %v829 = vpop.f32.mrf.mxu0
      %v830 = vadd.f32 0.0, %v829
      %v831 = vpop.f32.mrf.mxu0
      %832 = vdwg.mxu0
      %v833 = vadd.f32 %v754, %v804
      %v834 = vadd.f32 %v755, %v817
      %v835 = vadd.f32 %v756, %v830
      %v836 = vld [vmem:[%s209] sm:$0xff]
      %s837 = scalar_lea.vmem %s213, 32
      %v838 = vld [vmem:[%s837] sm:$0xf]
      %840 = vst [vmem:[#allocation1] ss:$4 sm:$0xff] %v836
      %v841 = vld.sshfl [vmem:[#allocation1] sm:$0xff pattern:$0x73625140]
      %v843 = vld.sshfl [vmem:[#allocation1 + $0x8] sm:$0xff pattern:$0x73625140]
      %v845 = vld.sshfl [vmem:[#allocation1 + $0x10] sm:$0xff pattern:$0x73625140]
      %v847 = vld.sshfl [vmem:[#allocation1 + $0x18] sm:$0xff pattern:$0x73625140]
      %849 = vrot.lane.b32.xlu0 %v841, 90
      %v850 = vpop.permute.xlu0 %849
      %851 = vrot.lane.b32.xlu0 %v843, 90
      %v852 = vpop.permute.xlu0 %851
      %853 = vrot.lane.b32.xlu0 %v845, 90
      %v854 = vpop.permute.xlu0 %853
      %855 = vrot.lane.b32.xlu0 %v847, 90
      %v856 = vpop.permute.xlu0 %855
      %vm857 = vcmask 736256
      %v858 = vsel %vm857, %v850, %v852
      %v859 = vsel %vm857, %v852, %v854
      %v860 = vsel %vm857, %v854, %v856
      %v862 = vsel %vm256, %v838, 0
      %v865 = vsel %vm260, %v858, 0
      %v868 = vsel %vm260, %v859, 0
      %v871 = vsel %vm260, %v860, 0
      %873 = vmatpush.bf16.msra.mxu0 0
      %874 = vmatpush.bf16.msra.mxu0 0
      %875 = vmatpush.bf16.msra.mxu0 0
      %876 = vmatpush.bf16.msra.mxu0 0
      %877 = vmatpush.bf16.msra.mxu0 0
      %878 = vmatpush.bf16.msra.mxu0 0
      %879 = vmatpush.bf16.msra.mxu0 0
      %880 = vmatpush.bf16.msra.mxu0 %v865
      %881 = vmatmul.bf16.gmra.mxu0 %v862
      %v882 = vpop.f32.mrf.mxu0
      %v883 = vadd.f32 0.0, %v882
      %v884 = vpop.f32.mrf.mxu0
      %885 = vdwg.mxu0
      %886 = vmatpush.bf16.msra.mxu0 0
      %887 = vmatpush.bf16.msra.mxu0 0
      %888 = vmatpush.bf16.msra.mxu0 0
      %889 = vmatpush.bf16.msra.mxu0 0
      %890 = vmatpush.bf16.msra.mxu0 0
      %891 = vmatpush.bf16.msra.mxu0 0
      %892 = vmatpush.bf16.msra.mxu0 0
      %893 = vmatpush.bf16.msra.mxu0 %v868
      %894 = vmatmul.bf16.gmra.mxu0 %v862
      %v895 = vpop.f32.mrf.mxu0
      %v896 = vadd.f32 0.0, %v895
      %v897 = vpop.f32.mrf.mxu0
      %898 = vdwg.mxu0
      %899 = vmatpush.bf16.msra.mxu0 0
      %900 = vmatpush.bf16.msra.mxu0 0
      %901 = vmatpush.bf16.msra.mxu0 0
      %902 = vmatpush.bf16.msra.mxu0 0
      %903 = vmatpush.bf16.msra.mxu0 0
      %904 = vmatpush.bf16.msra.mxu0 0
      %905 = vmatpush.bf16.msra.mxu0 0
      %906 = vmatpush.bf16.msra.mxu0 %v871
      %907 = vmatmul.bf16.gmra.mxu0 %v862
      %v908 = vpop.f32.mrf.mxu0
      %v909 = vadd.f32 0.0, %v908
      %v910 = vpop.f32.mrf.mxu0
      %911 = vdwg.mxu0
      %v912 = vadd.f32 %v833, %v883
      %v913 = vadd.f32 %v834, %v896
      %v914 = vadd.f32 %v835, %v909
      %916 = vset.pattern.permute.xlu0 0
      %917 = vperm.xlu0 %916, %v228
      %v918 = vpop.permute.xlu0 %917
      %v920 = vadd.f32 %v912, %v918
      %v921 = vadd.f32 %v913, %v918
      %v922 = vadd.f32 %v914, %v918
      %923 = vst [vmem:[%s226] sm:$0xff] %v920
      %924 = vst [vmem:[%s226 + $0x8] sm:$0xff] %v921
      %925 = vst [vmem:[%s226 + $0x10] sm:$0xff] %v922
      %p926 = scmp.lt.s32.totalorder %s18, 1
      %s927 = scalar_select %p926, %s18, 1
      %p928 = scmp.lt.s32.totalorder %s19, 0
      %s929 = scalar_select %p928, %s19, 0
      %s930 = smul.addr %s929, 3
      %s931 = smul.addr %s927, 3
      %s932 = sadd.s32 %s930, %s931
      %s933 = smul.addr %s932, 8
      %s934 = scalar_lea.vmem %s3, %s933
      // Predicated region
      $region33: #{a_call__.1} parent=31 // pred_check
        %p935 = pneg %p124
      $region34: #{a_call__.1} parent=31 // pred_check_branch
        %937 = sbr.rel (%p935) target = $region36
      $region35: #{a_call__.1} parent=31 // pred_region
        _
      $region36: #{a_call__.1} parent=31 // pred_fallthru
        _
    $region32: #{a_call__.1} parent=5 // pred_fallthru
      _
    %p938 = scmp.le.s32.totalorder 2, %s9
    // Predicated region
    $region37: #{a_call__.1} parent=5 // pred_check
      %p939 = pneg %p938
    $region38: #{a_call__.1} parent=5 // pred_check_branch
      %941 = sbr.rel (%p939) target = $region40
    $region39: #{a_call__.1} parent=5 // pred_region
      %s942 = ssub.s32 %s9, 2
      // Predicated region
      $region41: #{a_call__.1} parent=39 // pred_check
        %p943 = pneg %p130
      $region42: #{a_call__.1} parent=39 // pred_check_branch
        %945 = sbr.rel (%p943) target = $region44
      $region43: #{a_call__.1} parent=39 // pred_region
        %p946 = scmp.lt.s32.totalorder %s20, 1
        %s947 = scalar_select %p946, %s20, 1
        %p948 = scmp.lt.s32.totalorder %s21, 0
        %s949 = scalar_select %p948, %s21, 0
        %s950 = smul.addr %s949, 3
        %s951 = smul.addr %s947, 3
        %s952 = sadd.s32 %s950, %s951
        %s953 = smul.addr %s952, 8
        %s954 = scalar_lea.vmem %s3, %s953
      $region44: #{a_call__.1} parent=39 // pred_fallthru
        _
    $region40: #{a_call__.1} parent=5 // pred_fallthru
      _
  $region6: #{a_call__.1} parent=0 // loop_footer
    %s13 = sadd.s32 1, %s9
  $region7: #{a_call__.1} parent=0 // loop_footer_branch
    %8 = sbr.rel target = $region3
  $region8: #{a_call__.1} parent=0 // loop_exit
    _

</llo_original>
